<compile_context>
chip_gen: v7x
topology: tpu7x:2x2x1
jax: 0.10.0
libtpu: 0.0.40
codegen_flags: <defaults>
</compile_context>

<pallas_src>
import functools

import jax
import jax.numpy as jnp
from jax.experimental import pallas as pl
from jax.experimental.pallas import tpu as pltpu


def _ntxent_kernel(z1_ref, z2_ref, out_ref, *, inv_temp, inv_batch, block_rows):
    i = pl.program_id(0)

    @pl.when(i == 0)
    def _init():
        out_ref[...] = jnp.zeros_like(out_ref)

    eps2 = 1e-24  # F.normalize eps=1e-12, applied to the squared norm

    # --- normalization: f32 VPU math, rsqrt on the EUP, 1/T folded into z1n ---
    z1 = z1_ref[...].astype(jnp.float32)
    ss1 = jnp.sum(z1 * z1, axis=-1, keepdims=True)
    z1n = z1 * (jax.lax.rsqrt(jnp.maximum(ss1, eps2)) * inv_temp)

    z2 = z2_ref[...].astype(jnp.float32)
    ss2 = jnp.sum(z2 * z2, axis=-1, keepdims=True)
    z2n = z2 * jax.lax.rsqrt(jnp.maximum(ss2, eps2))

    # --- similarity block: bf16 MXU operands, f32 accumulation, no transpose ---
    sim = jax.lax.dot_general(
        z1n.astype(jnp.bfloat16),
        z2n.astype(jnp.bfloat16),
        dimension_numbers=(((1,), (1,)), ((), ())),
        preferred_element_type=jnp.float32,
    )  # (block_rows, B), already scaled by 1/temperature via z1n

    # --- logsumexp over the full key axis ---
    m = jnp.max(sim, axis=-1, keepdims=True)
    lse = jnp.log(jnp.sum(jnp.exp(sim - m), axis=-1, keepdims=True)) + m

    # --- positive-pair term: row-wise dot with the matching z2 rows (f32) ---
    start = pl.multiple_of(i * block_rows, block_rows)
    z2_pos = z2_ref[pl.ds(start, block_rows), :].astype(jnp.float32)
    ssp = jnp.sum(z2_pos * z2_pos, axis=-1, keepdims=True)
    z2n_pos = z2_pos * jax.lax.rsqrt(jnp.maximum(ssp, eps2))
    diag = jnp.sum(z1n * z2n_pos, axis=-1, keepdims=True)  # 1/T already in z1n

    # accumulate partial sum of (lse - diag) into the resident output block
    out_ref[...] = out_ref[...] + jnp.sum(lse - diag, keepdims=True)

    @pl.when(i == pl.num_programs(0) - 1)
    def _finalize():
        out_ref[...] = out_ref[...] * inv_batch


def _pick_block_rows(batch, block_rows):
    # Largest row tile (multiple of 8, capped at `block_rows`) dividing the
    # batch; fall back to a single full-batch block.
    cand = block_rows
    while cand >= 8:
        if batch % cand == 0:
            return cand
        cand //= 2
    return batch


def ntxent_loss(z1, z2, temperature=0.5, *, block_rows=256, vmem_limit_bytes=None):
    assert z1.shape == z2.shape and z1.ndim == 2
    b, d = z1.shape
    tm = _pick_block_rows(b, block_rows)
    grid = (b // tm,)

    kernel = functools.partial(
        _ntxent_kernel,
        inv_temp=float(1.0 / temperature),
        inv_batch=float(1.0 / b),
        block_rows=tm,
    )

    cost = pl.CostEstimate(
        flops=2 * b * b * d + 10 * b * d + 4 * b * b,
        transcendentals=b * b + 4 * b,
        bytes_accessed=2 * b * d * 4 + 4,
    )

    cp_kwargs = dict(dimension_semantics=("arbitrary",))
    if vmem_limit_bytes is not None:
        # Raise the scoped VMEM limit for large-batch configurations
        # (generation-specific: smaller budget on v7x, larger on v5e/v6e).
        cp_kwargs["vmem_limit_bytes"] = vmem_limit_bytes

    out = pl.pallas_call(
        kernel,
        out_shape=jax.ShapeDtypeStruct((1, 1), jnp.float32),
        grid=grid,
        in_specs=[
            pl.BlockSpec((tm, d), lambda i: (i, 0)),  # z1 row tile (double-buffered)
            pl.BlockSpec((b, d), lambda i: (0, 0)),   # z2 resident across the grid
        ],
        out_specs=pl.BlockSpec((1, 1), lambda i: (0, 0)),
        compiler_params=pltpu.CompilerParams(**cp_kwargs),
        cost_estimate=cost,
    )(z1, z2)
    return out[0, 0]


def _ntxent_ref(z1, z2, temperature=0.5):
    z1 = z1.astype(jnp.float32)
    z2 = z2.astype(jnp.float32)
    z1n = z1 / jnp.maximum(jnp.linalg.norm(z1, axis=-1, keepdims=True), 1e-12)
    z2n = z2 / jnp.maximum(jnp.linalg.norm(z2, axis=-1, keepdims=True), 1e-12)
    sim = (z1n @ z2n.T) / temperature
    lse = jax.scipy.special.logsumexp(sim, axis=-1)
    diag = jnp.diagonal(sim)
    return jnp.mean(lse - diag)


if __name__ == "__main__":
    key = jax.random.PRNGKey(0)
    k1, k2 = jax.random.split(key)
    # SimCLR projection-head outputs: (batch, projection_dim=128). Small batch;
    # block_rows=32 gives a 2-step row-tiled grid so the accumulator path runs.
    B, D = 64, 128
    z1 = jax.random.normal(k1, (B, D), dtype=jnp.float32)
    z2 = jax.random.normal(k2, (B, D), dtype=jnp.float32)

    loss = ntxent_loss(z1, z2, temperature=0.5, block_rows=32)
    loss = jax.block_until_ready(loss)

    ref = _ntxent_ref(z1, z2, temperature=0.5)
    # bf16 MXU operands (f32 accumulate) perturb logits slightly vs the pure-f32
    # reference, so the tolerance is relaxed accordingly.
    assert jnp.allclose(loss, ref, atol=3e-2, rtol=3e-2), (loss, ref)

    print("KERNEL_OK")
</pallas_src>

<mosaic_0001>
module attributes {stable_mosaic.version = 11 : i64} {
  func.func @_ntxent_kernel(%arg0: i32, %arg1: memref<32x128xf32, #tpu.memory_space<vmem>>, %arg2: memref<64x128xf32, #tpu.memory_space<vmem>>, %arg3: memref<1x1xf32, #tpu.memory_space<vmem>>) attributes {dimension_semantics = [#tpu.dimension_semantics<arbitrary>], iteration_bounds = array<i64: 2>, scalar_prefetch = 0 : i64, scratch_operands = 0 : i64, tpu.core_type = #tpu.core_type<tc>, window_params = [{transform_indices = @transform_0, window_bounds = array<i64: 32, 128>}, {pipeline_mode = #tpu.pipeline_mode<synchronous>, transform_indices = @transform_1, window_bounds = array<i64: 64, 128>}, {pipeline_mode = #tpu.pipeline_mode<synchronous>, transform_indices = @transform_2, window_bounds = array<i64: 1, 1>}]} {
    %c0_i32 = arith.constant 0 : i32
    %0 = arith.cmpi eq, %arg0, %c0_i32 : i32
    %1 = arith.extui %0 : i1 to i32
    %c0_i32_0 = arith.constant 0 : i32
    %2 = arith.cmpi ne, %1, %c0_i32_0 : i32
    scf.if %2 {
      %cst_21 = arith.constant 0.000000e+00 : f32
      %62 = vector.broadcast %cst_21 : f32 to vector<1x1xf32>
      %c0_22 = arith.constant 0 : index
      %c0_23 = arith.constant 0 : index
      %63 = vector.load %arg3[%c0_22, %c0_23] : memref<1x1xf32, #tpu.memory_space<vmem>>, vector<1x1xf32>
      tpu.vector_store %arg3[%c0_22, %c0_23], %62 {strides = array<i32>} : memref<1x1xf32, #tpu.memory_space<vmem>>, vector<1x1xf32>,
    } else {
    }
    %c0 = arith.constant 0 : index
    %c0_1 = arith.constant 0 : index
    %3 = vector.load %arg1[%c0, %c0_1] : memref<32x128xf32, #tpu.memory_space<vmem>>, vector<32x128xf32>
    %4 = arith.mulf %3, %3 : vector<32x128xf32>
    %cst = arith.constant dense<0.000000e+00> : vector<32xf32>
    %5 = vector.multi_reduction <add>, %4, %cst [1] : vector<32x128xf32> to vector<32xf32>
    %6 = vector.shape_cast %5 : vector<32xf32> to vector<32x1xf32>
    %cst_2 = arith.constant 1.000000e-24 : f32
    %7 = vector.broadcast %cst_2 : f32 to vector<32x1xf32>
    %8 = arith.maximumf %6, %7 : vector<32x1xf32>
    %9 = math.rsqrt %8 : vector<32x1xf32>
    %cst_3 = arith.constant 2.000000e+00 : f32
    %10 = vector.broadcast %cst_3 : f32 to vector<32x1xf32>
    %11 = arith.mulf %9, %10 : vector<32x1xf32>
    %12 = vector.broadcast %11 : vector<32x1xf32> to vector<32x128xf32>
    %13 = arith.mulf %3, %12 : vector<32x128xf32>
    %c0_4 = arith.constant 0 : index
    %c0_5 = arith.constant 0 : index
    %14 = vector.load %arg2[%c0_4, %c0_5] : memref<64x128xf32, #tpu.memory_space<vmem>>, vector<64x128xf32>
    %15 = arith.mulf %14, %14 : vector<64x128xf32>
    %cst_6 = arith.constant dense<0.000000e+00> : vector<64xf32>
    %16 = vector.multi_reduction <add>, %15, %cst_6 [1] : vector<64x128xf32> to vector<64xf32>
    %17 = vector.shape_cast %16 : vector<64xf32> to vector<64x1xf32>
    %cst_7 = arith.constant 1.000000e-24 : f32
    %18 = vector.broadcast %cst_7 : f32 to vector<64x1xf32>
    %19 = arith.maximumf %17, %18 : vector<64x1xf32>
    %20 = math.rsqrt %19 : vector<64x1xf32>
    %21 = vector.broadcast %20 : vector<64x1xf32> to vector<64x128xf32>
    %22 = arith.mulf %14, %21 : vector<64x128xf32>
    %23 = arith.truncf %13 : vector<32x128xf32> to vector<32x128xbf16>
    %24 = arith.truncf %22 : vector<64x128xf32> to vector<64x128xbf16>
    %cst_8 = arith.constant dense<0.000000e+00> : vector<32x64xf32>
    %25 = tpu.matmul %23, %24, %cst_8 {dimension_numbers = #tpu.dot_dimension_numbers<[1], [1], [0], [0], [0, 0, 1, 0], [], []>} : vector<32x128xbf16>, vector<64x128xbf16>, vector<32x64xf32> -> vector<32x64xf32>
    %cst_9 = arith.constant dense<0xFF800000> : vector<32xf32>
    %26 = vector.multi_reduction <maximumf>, %25, %cst_9 [1] : vector<32x64xf32> to vector<32xf32>
    %27 = vector.shape_cast %26 : vector<32xf32> to vector<32x1xf32>
    %28 = vector.broadcast %27 : vector<32x1xf32> to vector<32x64xf32>
    %29 = arith.subf %25, %28 : vector<32x64xf32>
    %30 = math.exp %29 : vector<32x64xf32>
    %cst_10 = arith.constant dense<0.000000e+00> : vector<32xf32>
    %31 = vector.multi_reduction <add>, %30, %cst_10 [1] : vector<32x64xf32> to vector<32xf32>
    %32 = vector.shape_cast %31 : vector<32xf32> to vector<32x1xf32>
    %33 = math.log %32 : vector<32x1xf32>
    %34 = arith.addf %33, %27 : vector<32x1xf32>
    %c32_i32 = arith.constant 32 : i32
    %35 = arith.muli %arg0, %c32_i32 : i32
    %36 = tpu.assume_multiple %35, 32 : i32
    %37 = arith.index_cast %36 : i32 to index
    %c0_11 = arith.constant 0 : index
    %38 = vector.load %arg2[%37, %c0_11] : memref<64x128xf32, #tpu.memory_space<vmem>>, vector<32x128xf32>
    %39 = arith.mulf %38, %38 : vector<32x128xf32>
    %cst_12 = arith.constant dense<0.000000e+00> : vector<32xf32>
    %40 = vector.multi_reduction <add>, %39, %cst_12 [1] : vector<32x128xf32> to vector<32xf32>
    %41 = vector.shape_cast %40 : vector<32xf32> to vector<32x1xf32>
    %cst_13 = arith.constant 1.000000e-24 : f32
    %42 = vector.broadcast %cst_13 : f32 to vector<32x1xf32>
    %43 = arith.maximumf %41, %42 : vector<32x1xf32>
    %44 = math.rsqrt %43 : vector<32x1xf32>
    %45 = vector.broadcast %44 : vector<32x1xf32> to vector<32x128xf32>
    %46 = arith.mulf %38, %45 : vector<32x128xf32>
    %47 = arith.mulf %13, %46 : vector<32x128xf32>
    %cst_14 = arith.constant dense<0.000000e+00> : vector<32xf32>
    %48 = vector.multi_reduction <add>, %47, %cst_14 [1] : vector<32x128xf32> to vector<32xf32>
    %49 = vector.shape_cast %48 : vector<32xf32> to vector<32x1xf32>
    %c0_15 = arith.constant 0 : index
    %c0_16 = arith.constant 0 : index
    %50 = vector.load %arg3[%c0_15, %c0_16] : memref<1x1xf32, #tpu.memory_space<vmem>>, vector<1x1xf32>
    %51 = arith.subf %34, %49 : vector<32x1xf32>
    %52 = vector.shape_cast %51 : vector<32x1xf32> to vector<1x32x1xf32>
    %cst_17 = arith.constant dense<0.000000e+00> : vector<1xf32>
    %53 = vector.multi_reduction <add>, %52, %cst_17 [1, 2] : vector<1x32x1xf32> to vector<1xf32>
    %54 = vector.shape_cast %53 : vector<1xf32> to vector<1x1x1xf32>
    %55 = vector.extract %54[0, 0, 0] : f32 from vector<1x1x1xf32>
    %56 = vector.broadcast %55 : f32 to vector<1x1xf32>
    %57 = arith.addf %50, %56 : vector<1x1xf32>
    %c0_18 = arith.constant 0 : index
    %c0_19 = arith.constant 0 : index
    %58 = vector.load %arg3[%c0_18, %c0_19] : memref<1x1xf32, #tpu.memory_space<vmem>>, vector<1x1xf32>
    tpu.vector_store %arg3[%c0_18, %c0_19], %57 {strides = array<i32>} : memref<1x1xf32, #tpu.memory_space<vmem>>, vector<1x1xf32>,
    %c1_i32 = arith.constant 1 : i32
    %59 = arith.cmpi eq, %arg0, %c1_i32 : i32
    %60 = arith.extui %59 : i1 to i32
    %c0_i32_20 = arith.constant 0 : i32
    %61 = arith.cmpi ne, %60, %c0_i32_20 : i32
    scf.if %61 {
      %c0_21 = arith.constant 0 : index
      %c0_22 = arith.constant 0 : index
      %62 = vector.load %arg3[%c0_21, %c0_22] : memref<1x1xf32, #tpu.memory_space<vmem>>, vector<1x1xf32>
      %cst_23 = arith.constant 1.562500e-02 : f32
      %63 = vector.broadcast %cst_23 : f32 to vector<1x1xf32>
      %64 = arith.mulf %62, %63 : vector<1x1xf32>
      %c0_24 = arith.constant 0 : index
      %c0_25 = arith.constant 0 : index
      %65 = vector.load %arg3[%c0_24, %c0_25] : memref<1x1xf32, #tpu.memory_space<vmem>>, vector<1x1xf32>
      tpu.vector_store %arg3[%c0_24, %c0_25], %64 {strides = array<i32>} : memref<1x1xf32, #tpu.memory_space<vmem>>, vector<1x1xf32>,
    } else {
    }
    return
  }
  func.func @transform_0(%arg0: i32) -> (i32, i32) {
    %c0_i32 = arith.constant 0 : i32
    %c0_i32_0 = arith.constant 0 : i32
    return %arg0, %c0_i32 : i32, i32
  }
  func.func @transform_1(%arg0: i32) -> (i32, i32) {
    %c0_i32 = arith.constant 0 : i32
    %c0_i32_0 = arith.constant 0 : i32
    %c0_i32_1 = arith.constant 0 : i32
    return %c0_i32, %c0_i32_0 : i32, i32
  }
  func.func @transform_2(%arg0: i32) -> (i32, i32) {
    %c0_i32 = arith.constant 0 : i32
    %c0_i32_0 = arith.constant 0 : i32
    %c0_i32_1 = arith.constant 0 : i32
    return %c0_i32, %c0_i32_0 : i32, i32
  }
}

</mosaic_0001>

<llo_original>
// kernel: tpu_custom_call.1
$region0: #{tpu_custom_call.1}
  #allocation0 [shape = 'u32[]', space=smem, size = 0x4, offset = 0x4, fixed_abs, tag = 'smem constant byte address 0x4 - core index']
  #allocation1 [shape = 'u32[144,128]{1,0:T(1,128)}', space=vmem, size = 0x12000, scoped, tag = 'internal scratch']
  %s0 = inlined_call_operand.hbm [shape: f32[64,128], index: 0, kind: input, shape index: {}]
  %s1 = inlined_call_operand.hbm [shape: f32[64,128], index: 1, kind: input, shape index: {}]
  %s2 = inlined_call_operand.hbm [shape: f32[1,1], index: 2, kind: output, shape index: {}]
  %s3 = sld [smem:[#allocation0]]
  $region57: #{tpu_custom_call.1} parent=0
    _
  %s5 = ssub.s32 1, %s3
  %s6 = scalar_select 0, %s5, %s3
  $region1: #{tpu_custom_call.1} parent=0
    #allocation2 [shape = 'u8[32768]{0}', space=vmem, size = 0x8000, scoped, tag = 'input window, operand 0']
    #allocation3 [shape = 's32[2]{0}', space=sflag, size = 0x8, scoped, tag = 'scoped memory for tpu_custom_call.1']
    #allocation4 [shape = 's32[2]{0}', space=sflag, size = 0x8, scoped, tag = 'scoped memory for tpu_custom_call.1']
    #allocation5 [shape = 'u8[32768]{0}', space=vmem, size = 0x8000, scoped, tag = 'input window, operand 1, single buffered']
    #allocation6 [shape = 's32[1]{0}', space=sflag, size = 0x4, scoped, tag = 'scoped memory for tpu_custom_call.1']
    #allocation7 [shape = 'u8[512]{0}', space=vmem, size = 0x400, scoped, tag = 'output window, operand 0, single buffered']
    %7 = vsyncpa [#allocation3], 0
    %s8 = scalar_lea.sflag [#allocation3], 1
    %9 = vsyncpa %s8, 0
    %10 = vsyncpa [#allocation6], 0
    %11 = vsyncpa [#allocation4], 0
    loop: start=0, step=1, limit=4
    $region2: #{tpu_custom_call.1} parent=1 // loop_pre_header
      _
    $region3: #{tpu_custom_call.1} parent=1 // loop_header
      %s13 = sphi 0, %s17
      %p14 = scmp.ge.s32.totalorder %s13, 4
      %s23 = sphi 0, %s25
      %s26 = sphi 0, %s23
      %s27 = sphi 0, %s26
      %s43 = sphi 0, %s27
      %s47 = sphi 0, %s47
      %s49 = sphi 0, %s47
      %s50 = sphi 0, %s49
      %s64 = sphi 0, %s50
      %s68 = sphi 0, %s68
      %s70 = sphi 0, %s68
      %s71 = sphi 0, %s70
      %s85 = sphi 0, %s71
    $region4: #{tpu_custom_call.1} parent=1 // loop_header_branch
      %16 = sbr.rel (%p14) target = $region8
    $region5: #{tpu_custom_call.1} parent=1 // loop_body
      %s18 = ssub.s32 %s13, 1
      %s19 = ssub.s32 %s13, 2
      %s20 = sadd.s32 %s13, 1
      %s21 = ssub.s32 %s13, %s20
      %p22 = scmp.eq.s32.totalorder %s21, 0
      %s24 = sadd.s32 %s23, 1
      %s25 = scalar_select %p22, %s23, %s24
      %p28 = pneg %p22
      %p29 = scmp.eq.s32.totalorder %s13, 1
      %p30 = por %p28, %p29
      %p31 = scmp.ne.s32.totalorder %s23, %s26
      %p32 = scmp.eq.s32.totalorder %s13, 0
      %p33 = por %p31, %p32
      %p34 = scmp.ne.s32.totalorder %s23, %s26
      %p35 = scmp.eq.s32.totalorder %s18, 1
      %p36 = por %p34, %p35
      %p37 = scmp.ne.s32.totalorder %s26, %s27
      %p38 = scmp.eq.s32.totalorder %s18, 0
      %p39 = por %p37, %p38
      %p40 = scmp.ne.s32.totalorder %s26, %s27
      %p41 = scmp.eq.s32.totalorder %s19, 1
      %p42 = por %p40, %p41
      %p44 = scmp.ne.s32.totalorder %s27, %s43
      %p45 = scmp.eq.s32.totalorder %s19, 0
      %p46 = por %p44, %p45
      %s48 = sadd.s32 %s47, 1
      %p51 = scmp.eq.s32.totalorder %s13, 1
      %p52 = scmp.ne.s32.totalorder %s47, %s49
      %p53 = scmp.eq.s32.totalorder %s13, 0
      %p54 = por %p52, %p53
      %p55 = scmp.ne.s32.totalorder %s47, %s49
      %p56 = scmp.eq.s32.totalorder %s18, 1
      %p57 = por %p55, %p56
      %p58 = scmp.ne.s32.totalorder %s49, %s50
      %p59 = scmp.eq.s32.totalorder %s18, 0
      %p60 = por %p58, %p59
      %p61 = scmp.ne.s32.totalorder %s49, %s50
      %p62 = scmp.eq.s32.totalorder %s19, 1
      %p63 = por %p61, %p62
      %p65 = scmp.ne.s32.totalorder %s50, %s64
      %p66 = scmp.eq.s32.totalorder %s19, 0
      %p67 = por %p65, %p66
      %s69 = sadd.s32 %s68, 1
      %p72 = scmp.eq.s32.totalorder %s13, 1
      %p73 = scmp.ne.s32.totalorder %s68, %s70
      %p74 = scmp.eq.s32.totalorder %s13, 0
      %p75 = por %p73, %p74
      %p76 = scmp.ne.s32.totalorder %s68, %s70
      %p77 = scmp.eq.s32.totalorder %s18, 1
      %p78 = por %p76, %p77
      %p79 = scmp.ne.s32.totalorder %s70, %s71
      %p80 = scmp.eq.s32.totalorder %s18, 0
      %p81 = por %p79, %p80
      %p82 = scmp.ne.s32.totalorder %s70, %s71
      %p83 = scmp.eq.s32.totalorder %s19, 1
      %p84 = por %p82, %p83
      %p86 = scmp.ne.s32.totalorder %s71, %s85
      %p87 = scmp.eq.s32.totalorder %s19, 0
      %p88 = por %p86, %p87
      %p89 = scmp.le.s32.totalorder 1, %s13
      %p90 = scmp.lt.s32.totalorder %s13, 3
      %p91 = pnand %p89, %p90
      %p92 = pneg %p91
      // Predicated region
      $region9: #{tpu_custom_call.1} parent=5 // pred_check
        _
      $region10: #{tpu_custom_call.1} parent=5 // pred_check_branch
        %94 = sbr.rel (%p91) target = $region12
      $region11: #{tpu_custom_call.1} parent=5 // pred_region
        %s95 = ssub.s32 %s13, 1
        // Predicated region
        $region13: #{tpu_custom_call.1} parent=11 // pred_check
          %p96 = pneg %p60
        $region14: #{tpu_custom_call.1} parent=11 // pred_check_branch
          %98 = sbr.rel (%p96) target = $region16
        $region15: #{tpu_custom_call.1} parent=11 // pred_region
          %s100 = ssub.s32 1024, 1024
          %101 = vsyncadd [#allocation6], %s100
          %s102 = sshll.u32 [#allocation5], 4
          %s103 = int_to_ptr.vmem [resolvable:$true] %s102
          %108 = dma.hbm_to_vmem [thread:$0]  %s1, 1024, %s103, [#allocation6], 128, 128, 8
        $region16: #{tpu_custom_call.1} parent=11 // pred_fallthru
          _
      $region12: #{tpu_custom_call.1} parent=5 // pred_fallthru
        _
      %p109 = scmp.lt.s32.totalorder %s13, 2
      // Predicated region
      $region17: #{tpu_custom_call.1} parent=5 // pred_check
        %p110 = pneg %p109
      $region18: #{tpu_custom_call.1} parent=5 // pred_check_branch
        %112 = sbr.rel (%p110) target = $region20
      $region19: #{tpu_custom_call.1} parent=5 // pred_region
        // Predicated region
        $region21: #{tpu_custom_call.1} parent=19 // pred_check
          %p113 = pneg %p33
        $region22: #{tpu_custom_call.1} parent=19 // pred_check_branch
          %115 = sbr.rel (%p113) target = $region24
        $region23: #{tpu_custom_call.1} parent=19 // pred_region
          %s116 = sand.u32 %s23, 1
          %s117 = scalar_lea.sflag [#allocation3], %s116
          %s118 = sand.u32 %s23, 1
          %s119 = smul.addr %s118, 32
          %s120 = scalar_lea.vmem [#allocation2], %s119
          %s121 = smul.u32 4, %s13
          %s123 = ssub.s32 512, 512
          %124 = vsyncadd %s117, %s123
          %s125 = smul.addr %s121, 128
          %s126 = scalar_lea.hbm %s0, %s125
          %s127 = sshll.u32 %s120, 4
          %s128 = int_to_ptr.vmem [resolvable:$true] %s127
          %133 = dma.hbm_to_vmem [thread:$0]  %s126, 512, %s128, %s117, 128, 128, 8
        $region24: #{tpu_custom_call.1} parent=19 // pred_fallthru
          _
      $region20: #{tpu_custom_call.1} parent=5 // pred_fallthru
        _
      %p134 = scmp.le.s32.totalorder 1, %s13
      %p135 = scmp.lt.s32.totalorder %s13, 3
      %p136 = pnand %p134, %p135
      %p137 = pneg %p136
      // Predicated region
      $region25: #{tpu_custom_call.1} parent=5 // pred_check
        _
      $region26: #{tpu_custom_call.1} parent=5 // pred_check_branch
        %139 = sbr.rel (%p136) target = $region28
      $region27: #{tpu_custom_call.1} parent=5 // pred_region
        %s140 = ssub.s32 %s13, 1
        %s141 = sand.u32 %s26, 1
        %s142 = scalar_lea.sflag [#allocation3], %s141
        %s143 = sand.u32 %s26, 1
        %s144 = smul.addr %s143, 32
        %s145 = scalar_lea.vmem [#allocation2], %s144
        // Predicated region
        $region29: #{tpu_custom_call.1} parent=27 // pred_check
          %p146 = pneg %p39
        $region30: #{tpu_custom_call.1} parent=27 // pred_check_branch
          %148 = sbr.rel (%p146) target = $region32
        $region31: #{tpu_custom_call.1} parent=27 // pred_region
          %149 = dma.done %s142, 512
        $region32: #{tpu_custom_call.1} parent=27 // pred_fallthru
          _
        // Predicated region
        $region33: #{tpu_custom_call.1} parent=27 // pred_check
          %p150 = pneg %p60
        $region34: #{tpu_custom_call.1} parent=27 // pred_check_branch
          %152 = sbr.rel (%p150) target = $region36
        $region35: #{tpu_custom_call.1} parent=27 // pred_region
          %153 = dma.done [#allocation6], 1024
        $region36: #{tpu_custom_call.1} parent=27 // pred_fallthru
          _
        %s154 = sand.u32 %s26, 1
        %s155 = scalar_lea.sflag [#allocation3], %s154
        %s156 = sand.u32 %s26, 1
        %s157 = smul.addr %s156, 32
        %s158 = scalar_lea.vmem [#allocation2], %s157
        %p159 = pneg %p39
        %p160 = pneg %p36
        %p161 = pneg %p60
        %p162 = pneg %p57
        %p163 = pneg %p81
        %p164 = pneg %p78
        %s165 = smul.u32 4, %s18
        %p167 = scmp.eq.s32.totalorder %s18, 0
        // Predicated region
        $region37: #{tpu_custom_call.1} parent=27 // pred_check
          %p168 = pneg %p167
        $region38: #{tpu_custom_call.1} parent=27 // pred_check_branch
          %170 = sbr.rel (%p168) target = $region40
        $region39: #{tpu_custom_call.1} parent=27 // pred_region
          %vm171 = vcmask 0
          %172 = vst.msk [vmem:[#allocation7] sm:$0x1] %vm171, 0.0
        $region40: #{tpu_custom_call.1} parent=27 // pred_fallthru
          _
        %v173 = vld [vmem:[%s145] sm:$0xff]
        %v174 = vld [vmem:[%s145 + $0x8] sm:$0xff]
        %v175 = vld [vmem:[%s145 + $0x10] sm:$0xff]
        %v176 = vld [vmem:[%s145 + $0x18] sm:$0xff]
        %v177 = vmul.f32 %v173, %v173
        %v178 = vmul.f32 %v174, %v174
        %v179 = vmul.f32 %v175, %v175
        %v180 = vmul.f32 %v176, %v176
        %181 = vadd.xlane.f32.xlu0 %v177
        %v182 = vpop.xlane.xlu0 %181
        %183 = vadd.xlane.f32.xlu0 %v178
        %v184 = vpop.xlane.xlu0 %183
        %185 = vadd.xlane.f32.xlu0 %v179
        %v186 = vpop.xlane.xlu0 %185
        %187 = vadd.xlane.f32.xlu0 %v180
        %v188 = vpop.xlane.xlu0 %187
        %v189 = vmax.f32 %v182, 1e-24
        %v190 = vmax.f32 %v184, 1e-24
        %v191 = vmax.f32 %v186, 1e-24
        %v192 = vmax.f32 %v188, 1e-24
        %v193 = vrsqrt.pop %v189
        %v194 = vrsqrt.pop %v190
        %v195 = vrsqrt.pop %v191
        %v196 = vrsqrt.pop %v192
        %v197 = vmul.f32 %v193, 2.0
        %v198 = vmul.f32 %v194, 2.0
        %v199 = vmul.f32 %v195, 2.0
        %v200 = vmul.f32 %v196, 2.0
        %v201 = vmul.f32 %v173, %v197
        %v202 = vmul.f32 %v174, %v198
        %v203 = vmul.f32 %v175, %v199
        %v204 = vmul.f32 %v176, %v200
        %v205 = vld [vmem:[#allocation5] sm:$0xff]
        %v206 = vld [vmem:[#allocation5 + $0x8] sm:$0xff]
        %v207 = vld [vmem:[#allocation5 + $0x10] sm:$0xff]
        %v208 = vld [vmem:[#allocation5 + $0x18] sm:$0xff]
        %v209 = vld [vmem:[#allocation5 + $0x20] sm:$0xff]
        %v210 = vld [vmem:[#allocation5 + $0x28] sm:$0xff]
        %v211 = vld [vmem:[#allocation5 + $0x30] sm:$0xff]
        %v212 = vld [vmem:[#allocation5 + $0x38] sm:$0xff]
        %v213 = vmul.f32 %v205, %v205
        %v214 = vmul.f32 %v206, %v206
        %v215 = vmul.f32 %v207, %v207
        %v216 = vmul.f32 %v208, %v208
        %v217 = vmul.f32 %v209, %v209
        %v218 = vmul.f32 %v210, %v210
        %v219 = vmul.f32 %v211, %v211
        %v220 = vmul.f32 %v212, %v212
        %221 = vadd.xlane.f32.xlu0 %v213
        %v222 = vpop.xlane.xlu0 %221
        %223 = vadd.xlane.f32.xlu0 %v214
        %v224 = vpop.xlane.xlu0 %223
        %225 = vadd.xlane.f32.xlu0 %v215
        %v226 = vpop.xlane.xlu0 %225
        %227 = vadd.xlane.f32.xlu0 %v216
        %v228 = vpop.xlane.xlu0 %227
        %229 = vadd.xlane.f32.xlu0 %v217
        %v230 = vpop.xlane.xlu0 %229
        %231 = vadd.xlane.f32.xlu0 %v218
        %v232 = vpop.xlane.xlu0 %231
        %233 = vadd.xlane.f32.xlu0 %v219
        %v234 = vpop.xlane.xlu0 %233
        %235 = vadd.xlane.f32.xlu0 %v220
        %v236 = vpop.xlane.xlu0 %235
        %v237 = vmax.f32 %v222, 1e-24
        %v238 = vmax.f32 %v224, 1e-24
        %v239 = vmax.f32 %v226, 1e-24
        %v240 = vmax.f32 %v228, 1e-24
        %v241 = vmax.f32 %v230, 1e-24
        %v242 = vmax.f32 %v232, 1e-24
        %v243 = vmax.f32 %v234, 1e-24
        %v244 = vmax.f32 %v236, 1e-24
        %v245 = vrsqrt.pop %v237
        %v246 = vrsqrt.pop %v238
        %v247 = vrsqrt.pop %v239
        %v248 = vrsqrt.pop %v240
        %v249 = vrsqrt.pop %v241
        %v250 = vrsqrt.pop %v242
        %v251 = vrsqrt.pop %v243
        %v252 = vrsqrt.pop %v244
        %v253 = vmul.f32 %v205, %v245
        %v254 = vmul.f32 %v206, %v246
        %v255 = vmul.f32 %v207, %v247
        %v256 = vmul.f32 %v208, %v248
        %v257 = vmul.f32 %v209, %v249
        %v258 = vmul.f32 %v210, %v250
        %v259 = vmul.f32 %v211, %v251
        %v260 = vmul.f32 %v212, %v252
        %v261 = vpack.c.bf16 %v202, %v201
        %v262 = vpack.c.bf16 %v204, %v203
        %v263 = vpack.c.bf16 %v254, %v253
        %v264 = vpack.c.bf16 %v256, %v255
        %v265 = vpack.c.bf16 %v258, %v257
        %v266 = vpack.c.bf16 %v260, %v259
        %267 = vmatprep.subr.bf16.mxu0 0
        %268 = vmatpush1.bf16.xpose.msra.mxu0 %v263
        %269 = vmatprep.subr.bf16.mxu0 0
        %270 = vmatpush1.bf16.xpose.msra.mxu0 %v264
        %271 = vmatprep.subr.bf16.mxu0 0
        %272 = vmatpush1.bf16.xpose.msra.mxu0 %v265
        %273 = vmatprep.subr.bf16.mxu0 0
        %274 = vmatpush1.bf16.xpose.msra.mxu0 %v266
        %275 = vmatprep.subr.bf16.mxu0 0
        %276 = vmatpush1.bf16.xpose.msra.mxu0 0
        %277 = vmatprep.subr.bf16.mxu0 0
        %278 = vmatpush1.bf16.xpose.msra.mxu0 0
        %279 = vmatprep.subr.bf16.mxu0 0
        %280 = vmatpush1.bf16.xpose.msra.mxu0 0
        %281 = vmatprep.subr.bf16.mxu0 0
        %282 = vmatpush1.bf16.xpose.msra.mxu0 0
        %283 = vmatprep.subr.bf16.mxu0 0
        %284 = vmatpush1.bf16.xpose.msra.mxu0 0
        %285 = vmatprep.subr.bf16.mxu0 0
        %286 = vmatpush1.bf16.xpose.msra.mxu0 0
        %287 = vmatprep.subr.bf16.mxu0 0
        %288 = vmatpush1.bf16.xpose.msra.mxu0 0
        %289 = vmatprep.subr.bf16.mxu0 0
        %290 = vmatpush1.bf16.xpose.msra.mxu0 0
        %291 = vmatprep.subr.bf16.mxu0 0
        %292 = vmatpush1.bf16.xpose.msra.mxu0 0
        %293 = vmatprep.subr.bf16.mxu0 0
        %294 = vmatpush1.bf16.xpose.msra.mxu0 0
        %295 = vmatprep.subr.bf16.mxu0 0
        %296 = vmatpush1.bf16.xpose.msra.mxu0 0
        %297 = vmatprep.subr.bf16.mxu0 0
        %298 = vmatpush1.bf16.xpose.msra.mxu0 0
        %299 = vmatprep.mubr.bf16.mxu0 0
        %300 = vmatmul.mubr.bf16.gmra.mrb[0].mxu0 %v261
        %v301 = vpop.f32.mrb[0].mxu0
        %v302 = vadd.f32 0.0, %v301
        %v303 = vpop.f32.mrb[0].mxu0
        %v304 = vpop.f32.mrb[0].mxu0
        %v305 = vadd.f32 0.0, %v304
        %v306 = vpop.f32.mrb[0].mxu0
        %307 = vmatprep.mubr.bf16.mxu0 0
        %308 = vmatmul.mubr.bf16.gmra.mrb[0].mxu0 %v262
        %v309 = vpop.f32.mrb[0].mxu0
        %v310 = vadd.f32 0.0, %v309
        %v311 = vpop.f32.mrb[0].mxu0
        %v312 = vpop.f32.mrb[0].mxu0
        %v313 = vadd.f32 0.0, %v312
        %v314 = vpop.f32.mrb[0].mxu0
        %315 = vdwg.mxu0
        %vm316 = vcmask 523264
        %v317 = vsel %vm316, %v302, -inf
        %318 = vmax.xlane.f32.xlu0 %v317
        %v319 = vpop.xlane.xlu0 %318
        %v320 = vsel %vm316, %v305, -inf
        %321 = vmax.xlane.f32.xlu0 %v320
        %v322 = vpop.xlane.xlu0 %321
        %v323 = vsel %vm316, %v310, -inf
        %324 = vmax.xlane.f32.xlu0 %v323
        %v325 = vpop.xlane.xlu0 %324
        %v326 = vsel %vm316, %v313, -inf
        %327 = vmax.xlane.f32.xlu0 %v326
        %v328 = vpop.xlane.xlu0 %327
        %v329 = vsub.f32 %v302, %v319
        %v330 = vsub.f32 %v305, %v322
        %v331 = vsub.f32 %v310, %v325
        %v332 = vsub.f32 %v313, %v328
        %v333 = vmul.f32 %v329, 1.442695
        %v334 = vpow.pop %v333
        %v335 = vmul.f32 %v330, 1.442695
        %v336 = vpow.pop %v335
        %v337 = vmul.f32 %v331, 1.442695
        %v338 = vpow.pop %v337
        %v339 = vmul.f32 %v332, 1.442695
        %v340 = vpow.pop %v339
        %v341 = vsel %vm316, %v334, 0.0
        %342 = vadd.xlane.f32.xlu0 %v341
        %v343 = vpop.xlane.xlu0 %342
        %v344 = vsel %vm316, %v336, 0.0
        %345 = vadd.xlane.f32.xlu0 %v344
        %v346 = vpop.xlane.xlu0 %345
        %v347 = vsel %vm316, %v338, 0.0
        %348 = vadd.xlane.f32.xlu0 %v347
        %v349 = vpop.xlane.xlu0 %348
        %v350 = vsel %vm316, %v340, 0.0
        %351 = vadd.xlane.f32.xlu0 %v350
        %v352 = vpop.xlane.xlu0 %351
        %v353 = vlog2.pop %v343
        %v354 = vmul.f32 %v353, 0.6931472
        %v355 = vlog2.pop %v346
        %v356 = vmul.f32 %v355, 0.6931472
        %v357 = vlog2.pop %v349
        %v358 = vmul.f32 %v357, 0.6931472
        %v359 = vlog2.pop %v352
        %v360 = vmul.f32 %v359, 0.6931472
        %v361 = vadd.f32 %v354, %v319
        %v362 = vadd.f32 %v356, %v322
        %v363 = vadd.f32 %v358, %v325
        %v364 = vadd.f32 %v360, %v328
        %s365 = smul.u32 %s18, 32
        %s366 = scalar_lea.vmem [#allocation5], %s365
        %v367 = vld [vmem:[%s366] sm:$0xff]
        %v368 = vld [vmem:[%s366 + $0x8] sm:$0xff]
        %v369 = vld [vmem:[%s366 + $0x10] sm:$0xff]
        %v370 = vld [vmem:[%s366 + $0x18] sm:$0xff]
        %v371 = vmul.f32 %v367, %v367
        %v372 = vmul.f32 %v368, %v368
        %v373 = vmul.f32 %v369, %v369
        %v374 = vmul.f32 %v370, %v370
        %375 = vadd.xlane.f32.xlu0 %v371
        %v376 = vpop.xlane.xlu0 %375
        %377 = vadd.xlane.f32.xlu0 %v372
        %v378 = vpop.xlane.xlu0 %377
        %379 = vadd.xlane.f32.xlu0 %v373
        %v380 = vpop.xlane.xlu0 %379
        %381 = vadd.xlane.f32.xlu0 %v374
        %v382 = vpop.xlane.xlu0 %381
        %v383 = vmax.f32 %v376, 1e-24
        %v384 = vmax.f32 %v378, 1e-24
        %v385 = vmax.f32 %v380, 1e-24
        %v386 = vmax.f32 %v382, 1e-24
        %v387 = vrsqrt.pop %v383
        %v388 = vrsqrt.pop %v384
        %v389 = vrsqrt.pop %v385
        %v390 = vrsqrt.pop %v386
        %v391 = vmul.f32 %v367, %v387
        %v392 = vmul.f32 %v368, %v388
        %v393 = vmul.f32 %v369, %v389
        %v394 = vmul.f32 %v370, %v390
        %v395 = vmul.f32 %v201, %v391
        %v396 = vmul.f32 %v202, %v392
        %v397 = vmul.f32 %v203, %v393
        %v398 = vmul.f32 %v204, %v394
        %399 = vadd.xlane.f32.xlu0 %v395
        %v400 = vpop.xlane.xlu0 %399
        %401 = vadd.xlane.f32.xlu0 %v396
        %v402 = vpop.xlane.xlu0 %401
        %403 = vadd.xlane.f32.xlu0 %v397
        %v404 = vpop.xlane.xlu0 %403
        %405 = vadd.xlane.f32.xlu0 %v398
        %v406 = vpop.xlane.xlu0 %405
        %v407 = vld [vmem:[#allocation7] sm:$0x1]
        %v408 = vsub.f32 %v361, %v400
        %v409 = vsub.f32 %v362, %v402
        %v410 = vsub.f32 %v363, %v404
        %v411 = vsub.f32 %v364, %v406
        %vm412 = vcmask 7168
        %v413 = vsel %vm412, %v408, 0.0
        %v414 = vsel %vm412, %v409, 0.0
        %v415 = vadd.f32 %v413, %v414
        %v416 = vsel %vm412, %v410, 0.0
        %v417 = vadd.f32 %v415, %v416
        %v418 = vsel %vm412, %v411, 0.0
        %v419 = vadd.f32 %v417, %v418
        %420 = vadd.xlane.f32.xlu0 %v419
        %v421 = vpop.xlane.xlu0 %420
        %v422 = vrot.slane %v421, 4
        %v423 = vadd.f32 %v421, %v422
        %v424 = vrot.slane %v423, 2
        %v425 = vadd.f32 %v423, %v424
        %v426 = vrot.slane %v425, 1
        %v427 = vadd.f32 %v425, %v426
        %s428 = vtos %v427
        %v429 = vstv %s428
        %v430 = vadd.f32 %v407, %v429
        %vm431 = vcmask 0
        %432 = vst.msk [vmem:[#allocation7] sm:$0x1] %vm431, %v430
        %p433 = scmp.eq.s32.totalorder %s18, 1
        // Predicated region
        $region41: #{tpu_custom_call.1} parent=27 // pred_check
          %p434 = pneg %p433
        $region42: #{tpu_custom_call.1} parent=27 // pred_check_branch
          %436 = sbr.rel (%p434) target = $region44
        $region43: #{tpu_custom_call.1} parent=27 // pred_region
          %v437 = vld [vmem:[#allocation7] sm:$0x1]
          %v438 = vmul.f32 %v437, 0.015625
          %439 = vst.msk [vmem:[#allocation7] sm:$0x1] %vm431, %v438
        $region44: #{tpu_custom_call.1} parent=27 // pred_fallthru
          _
        // Predicated region
        $region45: #{tpu_custom_call.1} parent=27 // pred_check
          %p440 = pneg %p78
        $region46: #{tpu_custom_call.1} parent=27 // pred_check_branch
          %442 = sbr.rel (%p440) target = $region48
        $region47: #{tpu_custom_call.1} parent=27 // pred_region
          %s444 = ssub.s32 16, 16
          %445 = vsyncadd [#allocation4], %s444
          %s447 = sshll.u32 [#allocation7], 4
          %s448 = int_to_ptr.vmem [resolvable:$true] %s447
          %450 = dma.vmem_to_hbm [thread:$0]  %s448, 16, %s2, [#allocation4]
        $region48: #{tpu_custom_call.1} parent=27 // pred_fallthru
          _
        // Predicated region
        $region49: #{tpu_custom_call.1} parent=27 // pred_check
          %p451 = pneg %p78
        $region50: #{tpu_custom_call.1} parent=27 // pred_check_branch
          %453 = sbr.rel (%p451) target = $region52
        $region51: #{tpu_custom_call.1} parent=27 // pred_region
          %454 = dma.done [#allocation4], 16
        $region52: #{tpu_custom_call.1} parent=27 // pred_fallthru
          _
      $region28: #{tpu_custom_call.1} parent=5 // pred_fallthru
        _
      %p455 = scmp.le.s32.totalorder 2, %s13
      // Predicated region
      $region53: #{tpu_custom_call.1} parent=5 // pred_check
        %p456 = pneg %p455
      $region54: #{tpu_custom_call.1} parent=5 // pred_check_branch
        %458 = sbr.rel (%p456) target = $region56
      $region55: #{tpu_custom_call.1} parent=5 // pred_region
        %s459 = ssub.s32 %s13, 2
      $region56: #{tpu_custom_call.1} parent=5 // pred_fallthru
        _
    $region6: #{tpu_custom_call.1} parent=1 // loop_footer
      %s17 = sadd.s32 1, %s13
    $region7: #{tpu_custom_call.1} parent=1 // loop_footer_branch
      %12 = sbr.rel target = $region3
    $region8: #{tpu_custom_call.1} parent=1 // loop_exit
      _
    %460 = vsyncpa [#allocation3], 1
    %s461 = scalar_lea.sflag [#allocation3], 1
    %462 = vsyncpa %s461, 1
    %463 = vsyncpa [#allocation6], 1
    %464 = vsyncpa [#allocation4], 1
    %s465 = scalar_lea.sflag [#allocation4], 1
    %466 = vsyncpa %s465, 1

</llo_original>
